<compile_context>
chip_gen: v7x
topology: tpu7x:2x2x1
jax: 0.10.0
libtpu: 0.0.40
codegen_flags: <defaults>
</compile_context>

<pallas_src>
import functools
import math

import jax
import jax.numpy as jnp
from jax.experimental import pallas as pl
from jax.experimental.pallas import tpu as pltpu


def _topk_kernel(x_ref, o_ref, *, k: int):
    """Per-tile TopK(k) + ReLU along the lane (last) axis.

    x_ref / o_ref: (block_rows, D) tiles.
    """
    x = x_ref[...]
    neg_inf = jnp.array(-jnp.inf, dtype=x.dtype)
    zero = jnp.zeros((), dtype=x.dtype)

    # k is small & static: unrolled repeated row-max finds the k-th largest
    # value per row.  The masking pass is skipped on the final iteration
    # (only `thresh` is needed afterwards).
    work = x
    thresh = jnp.max(work, axis=-1, keepdims=True)
    for _ in range(k - 1):
        work = jnp.where(work >= thresh, neg_inf, work)
        thresh = jnp.max(work, axis=-1, keepdims=True)

    # TODO(synk): torch.topk keeps exactly k entries even on ties at the k-th
    # value (and surfaces NaN/-inf inputs); this threshold mask keeps all tied
    # entries -- irrelevant for continuous random inputs.
    o_ref[...] = jnp.where(x >= thresh, jnp.maximum(x, zero), zero).astype(o_ref.dtype)


def _choose_block_rows(rows: int, d: int, itemsize: int) -> int:
    """Largest row tile keeping pipeline buffers + temps inside VMEM on all gens."""
    sublane = max(8, 32 // itemsize)          # 8 for f32, 16 for bf16
    # 2 pipeline buffers for input + 2 for output + ~3 live tile-sized temps.
    per_row_bytes = 7 * d * itemsize
    budget_bytes = 28 * 1024 * 1024           # safe even on v7x's 64 MiB VMEM
    br = max(sublane, budget_bytes // max(per_row_bytes, 1))
    br = min(br, 1024)
    if br >= rows:
        return rows                           # one full-extent block (always legal)
    return max(sublane, (br // sublane) * sublane)


def topk_activation(x: jax.Array, k: int, *, block_rows: int | None = None) -> jax.Array:
    """Apply TopK(k) activation along the last dim of x via a Pallas kernel."""
    orig_shape = x.shape
    d = orig_shape[-1]
    assert 1 <= k <= d, "k must satisfy 1 <= k <= feature dim"
    rows = math.prod(orig_shape[:-1]) if len(orig_shape) > 1 else 1
    x2 = x.reshape(rows, d)

    if block_rows is None:
        block_rows = _choose_block_rows(rows, d, x2.dtype.itemsize)

    # Lane axis uses the full feature dim D per block (always a legal block
    # shape).  Real SAE widths are multiples of 128, giving lane-dense stores;
    # tiny demo widths simply fall back to masked partial stores.
    grid = (pl.cdiv(rows, block_rows),)

    out = pl.pallas_call(
        functools.partial(_topk_kernel, k=k),
        out_shape=jax.ShapeDtypeStruct((rows, d), x.dtype),
        grid_spec=pltpu.PrefetchScalarGridSpec(
            num_scalar_prefetch=0,
            grid=grid,
            in_specs=[pl.BlockSpec((block_rows, d), lambda i: (i, 0))],
            out_specs=pl.BlockSpec((block_rows, d), lambda i: (i, 0)),
        ),
        compiler_params=pltpu.CompilerParams(
            dimension_semantics=("parallel",),
            vmem_limit_bytes=64 * 1024 * 1024,   # above the 16/32 MiB scoped defaults
        ),
    )(x2)

    return out.reshape(orig_shape)


def _topk_reference(x: jax.Array, k: int) -> jax.Array:
    """Pure-JAX reference matching the PyTorch module."""
    vals, idx = jax.lax.top_k(x, k)
    vals = jnp.maximum(vals, 0.0)
    onehot = jax.nn.one_hot(idx, x.shape[-1], dtype=x.dtype)
    return jnp.einsum("...kd,...k->...d", onehot, vals)


if __name__ == "__main__":
    key = jax.random.PRNGKey(0)
    k1, k2 = jax.random.split(key)

    # (batch, seq, hidden) consistent with the SAE forward; small k.
    batch, seq, hidden, k = 2, 8, 64, 4
    x = jax.random.normal(k1, (batch, seq, hidden), dtype=jnp.float32)
    out = jax.block_until_ready(topk_activation(x, k))
    ref = _topk_reference(x, k)
    assert out.shape == x.shape and out.dtype == x.dtype
    assert jnp.allclose(out, ref, atol=1e-6, rtol=1e-6)
    assert int(jnp.max(jnp.sum(out != 0, axis=-1))) <= k

    # Uneven row count: exercises the cdiv grid with an implicitly-masked
    # boundary block (no host-side pad / slice copies anywhere).
    x2 = jax.random.normal(k2, (2, 5, 64), dtype=jnp.float32)
    out2 = jax.block_until_ready(topk_activation(x2, 3, block_rows=8))
    ref2 = _topk_reference(x2, 3)
    assert out2.shape == x2.shape and out2.dtype == x2.dtype
    assert jnp.allclose(out2, ref2, atol=1e-6, rtol=1e-6)
    assert int(jnp.max(jnp.sum(out2 != 0, axis=-1))) <= 3

    print("KERNEL_OK")
</pallas_src>

<mosaic_0001>
module attributes {stable_mosaic.version = 11 : i64} {
  func.func @_topk_kernel(%arg0: i32, %arg1: memref<16x64xf32, #tpu.memory_space<vmem>>, %arg2: memref<16x64xf32, #tpu.memory_space<vmem>>) attributes {dimension_semantics = [#tpu.dimension_semantics<parallel>], iteration_bounds = array<i64: 1>, scalar_prefetch = 0 : i64, scratch_operands = 0 : i64, tpu.core_type = #tpu.core_type<tc>, window_params = [{transform_indices = @transform_0, window_bounds = array<i64: 16, 64>}, {transform_indices = @transform_1, window_bounds = array<i64: 16, 64>}]} {
    %c0 = arith.constant 0 : index
    %c0_0 = arith.constant 0 : index
    %0 = vector.load %arg1[%c0, %c0_0] : memref<16x64xf32, #tpu.memory_space<vmem>>, vector<16x64xf32>
    %cst = arith.constant dense<0xFF800000> : vector<16xf32>
    %1 = vector.multi_reduction <maximumf>, %0, %cst [1] : vector<16x64xf32> to vector<16xf32>
    %2 = vector.shape_cast %1 : vector<16xf32> to vector<16x1xf32>
    %3 = vector.broadcast %2 : vector<16x1xf32> to vector<16x64xf32>
    %4 = arith.cmpf oge, %0, %3 : vector<16x64xf32>
    %cst_1 = arith.constant 0xFF800000 : f32
    %5 = vector.broadcast %cst_1 : f32 to vector<16x64xf32>
    %6 = arith.select %4, %5, %0 : vector<16x64xi1>, vector<16x64xf32>
    %cst_2 = arith.constant dense<0xFF800000> : vector<16xf32>
    %7 = vector.multi_reduction <maximumf>, %6, %cst_2 [1] : vector<16x64xf32> to vector<16xf32>
    %8 = vector.shape_cast %7 : vector<16xf32> to vector<16x1xf32>
    %9 = vector.broadcast %8 : vector<16x1xf32> to vector<16x64xf32>
    %10 = arith.cmpf oge, %6, %9 : vector<16x64xf32>
    %cst_3 = arith.constant 0xFF800000 : f32
    %11 = vector.broadcast %cst_3 : f32 to vector<16x64xf32>
    %12 = arith.select %10, %11, %6 : vector<16x64xi1>, vector<16x64xf32>
    %cst_4 = arith.constant dense<0xFF800000> : vector<16xf32>
    %13 = vector.multi_reduction <maximumf>, %12, %cst_4 [1] : vector<16x64xf32> to vector<16xf32>
    %14 = vector.shape_cast %13 : vector<16xf32> to vector<16x1xf32>
    %15 = vector.broadcast %14 : vector<16x1xf32> to vector<16x64xf32>
    %16 = arith.cmpf oge, %12, %15 : vector<16x64xf32>
    %cst_5 = arith.constant 0xFF800000 : f32
    %17 = vector.broadcast %cst_5 : f32 to vector<16x64xf32>
    %18 = arith.select %16, %17, %12 : vector<16x64xi1>, vector<16x64xf32>
    %cst_6 = arith.constant dense<0xFF800000> : vector<16xf32>
    %19 = vector.multi_reduction <maximumf>, %18, %cst_6 [1] : vector<16x64xf32> to vector<16xf32>
    %20 = vector.shape_cast %19 : vector<16xf32> to vector<16x1xf32>
    %21 = vector.broadcast %20 : vector<16x1xf32> to vector<16x64xf32>
    %22 = arith.cmpf oge, %0, %21 : vector<16x64xf32>
    %cst_7 = arith.constant 0.000000e+00 : f32
    %23 = vector.broadcast %cst_7 : f32 to vector<16x64xf32>
    %24 = arith.maximumf %0, %23 : vector<16x64xf32>
    %cst_8 = arith.constant 0.000000e+00 : f32
    %25 = vector.broadcast %cst_8 : f32 to vector<16x64xf32>
    %26 = arith.select %22, %24, %25 : vector<16x64xi1>, vector<16x64xf32>
    %c0_9 = arith.constant 0 : index
    %c0_10 = arith.constant 0 : index
    %27 = vector.load %arg2[%c0_9, %c0_10] : memref<16x64xf32, #tpu.memory_space<vmem>>, vector<16x64xf32>
    tpu.vector_store %arg2[%c0_9, %c0_10], %26 {strides = array<i32>} : memref<16x64xf32, #tpu.memory_space<vmem>>, vector<16x64xf32>,
    return
  }
  func.func @transform_0(%arg0: i32) -> (i32, i32) {
    %c0_i32 = arith.constant 0 : i32
    %c0_i32_0 = arith.constant 0 : i32
    return %arg0, %c0_i32 : i32, i32
  }
  func.func @transform_1(%arg0: i32) -> (i32, i32) {
    %c0_i32 = arith.constant 0 : i32
    %c0_i32_0 = arith.constant 0 : i32
    return %arg0, %c0_i32 : i32, i32
  }
}

</mosaic_0001>

<llo_original>
// kernel: tpu_custom_call.1
$region0: #{tpu_custom_call.1}
  #allocation0 [shape = 'u32[]', space=smem, size = 0x4, offset = 0x4, fixed_abs, tag = 'smem constant byte address 0x4 - core index']
  #allocation1 [shape = 'u32[144,128]{1,0:T(1,128)}', space=vmem, size = 0x12000, scoped, tag = 'internal scratch']
  %s0 = inlined_call_operand.hbm [shape: f32[16,64], index: 0, kind: input, shape index: {}]
  %s1 = inlined_call_operand.hbm [shape: f32[16,64], index: 1, kind: output, shape index: {}]
  %s2 = sld [smem:[#allocation0]]
  $region18: #{tpu_custom_call.1} parent=0
    _
  %s4 = ssub.s32 1, %s2
  %s5 = scalar_select 0, %s4, %s2
  $region1: #{tpu_custom_call.1} parent=0
    #allocation2 [shape = 'u8[8192]{0}', space=vmem, size = 0x2000, scoped, tag = 'input window, operand 0, single buffered']
    #allocation3 [shape = 's32[1]{0}', space=sflag, size = 0x4, scoped, tag = 'scoped memory for tpu_custom_call.1']
    #allocation4 [shape = 's32[1]{0}', space=sflag, size = 0x4, scoped, tag = 'scoped memory for tpu_custom_call.1']
    #allocation5 [shape = 'u8[8192]{0}', space=vmem, size = 0x2000, scoped, tag = 'output window, operand 0, single buffered']
    %6 = vsyncpa [#allocation3], 0
    %7 = vsyncpa [#allocation4], 0
    // Predicated region
    $region2: #{tpu_custom_call.1} parent=1 // pred_check
      _
    $region3: #{tpu_custom_call.1} parent=1 // pred_check_branch
      %9 = sbr.rel (0) target = $region5
    $region4: #{tpu_custom_call.1} parent=1 // pred_region
      %s11 = ssub.s32 256, 256
      %12 = vsyncadd [#allocation3], %s11
      %s13 = sshll.u32 [#allocation2], 4
      %s14 = int_to_ptr.vmem [resolvable:$true] %s13
      %19 = dma.hbm_to_vmem [thread:$0]  %s0, 256, %s14, [#allocation3], 128, 128, 8
    $region5: #{tpu_custom_call.1} parent=1 // pred_fallthru
      _
    // Predicated region
    $region6: #{tpu_custom_call.1} parent=1 // pred_check
      _
    $region7: #{tpu_custom_call.1} parent=1 // pred_check_branch
      %21 = sbr.rel (0) target = $region9
    $region8: #{tpu_custom_call.1} parent=1 // pred_region
      %22 = dma.done [#allocation3], 256
    $region9: #{tpu_custom_call.1} parent=1 // pred_fallthru
      _
    %v23 = vld [vmem:[#allocation2] sm:$0xff]
    %v24 = vld [vmem:[#allocation2 + $0x8] sm:$0xff]
    %vm25 = vcmask 523264
    %v26 = vsel %vm25, %v23, -inf
    %27 = vmax.xlane.f32.xlu0 %v26
    %v28 = vpop.xlane.xlu0 %27
    %v29 = vsel %vm25, %v24, -inf
    %30 = vmax.xlane.f32.xlu0 %v29
    %v31 = vpop.xlane.xlu0 %30
    %vm32 = vcmp.ge.f32.partialorder %v23, %v28
    %vm33 = vcmp.ge.f32.partialorder %v24, %v31
    %v34 = vsel %vm32, -inf, %v23
    %v35 = vsel %vm33, -inf, %v24
    %v36 = vsel %vm25, %v34, -inf
    %37 = vmax.xlane.f32.xlu0 %v36
    %v38 = vpop.xlane.xlu0 %37
    %v39 = vsel %vm25, %v35, -inf
    %40 = vmax.xlane.f32.xlu0 %v39
    %v41 = vpop.xlane.xlu0 %40
    %vm42 = vcmp.ge.f32.partialorder %v34, %v38
    %vm43 = vcmp.ge.f32.partialorder %v35, %v41
    %v44 = vsel %vm42, -inf, %v34
    %v45 = vsel %vm43, -inf, %v35
    %v46 = vsel %vm25, %v44, -inf
    %47 = vmax.xlane.f32.xlu0 %v46
    %v48 = vpop.xlane.xlu0 %47
    %v49 = vsel %vm25, %v45, -inf
    %50 = vmax.xlane.f32.xlu0 %v49
    %v51 = vpop.xlane.xlu0 %50
    %vm52 = vcmp.ge.f32.partialorder %v44, %v48
    %vm53 = vcmp.ge.f32.partialorder %v45, %v51
    %v54 = vsel %vm52, -inf, %v44
    %v55 = vsel %vm53, -inf, %v45
    %v56 = vsel %vm25, %v54, -inf
    %57 = vmax.xlane.f32.xlu0 %v56
    %v58 = vpop.xlane.xlu0 %57
    %v59 = vsel %vm25, %v55, -inf
    %60 = vmax.xlane.f32.xlu0 %v59
    %v61 = vpop.xlane.xlu0 %60
    %vm62 = vcmp.ge.f32.partialorder %v23, %v58
    %vm63 = vcmp.ge.f32.partialorder %v24, %v61
    %v64 = vmax.f32 %v23, 0.0
    %v65 = vmax.f32 %v24, 0.0
    %v66 = vsel %vm62, %v64, 0.0
    %v67 = vsel %vm63, %v65, 0.0
    %68 = vst.msk [vmem:[#allocation5] sm:$0xff] %vm25, %v66
    %69 = vst.msk [vmem:[#allocation5 + $0x8] sm:$0xff] %vm25, %v67
    // Predicated region
    $region10: #{tpu_custom_call.1} parent=1 // pred_check
      _
    $region11: #{tpu_custom_call.1} parent=1 // pred_check_branch
      %71 = sbr.rel (0) target = $region13
    $region12: #{tpu_custom_call.1} parent=1 // pred_region
      %s73 = ssub.s32 256, 256
      %74 = vsyncadd [#allocation4], %s73
      %s75 = sshll.u32 [#allocation5], 4
      %s76 = int_to_ptr.vmem [resolvable:$true] %s75
      %81 = dma.vmem_to_hbm [thread:$0]  %s76, 256, %s1, [#allocation4], 128, 128, 8
    $region13: #{tpu_custom_call.1} parent=1 // pred_fallthru
      _
    // Predicated region
    $region14: #{tpu_custom_call.1} parent=1 // pred_check
      _
    $region15: #{tpu_custom_call.1} parent=1 // pred_check_branch
      %83 = sbr.rel (0) target = $region17
    $region16: #{tpu_custom_call.1} parent=1 // pred_region
      %84 = dma.done [#allocation4], 256
    $region17: #{tpu_custom_call.1} parent=1 // pred_fallthru
      _
    %85 = vsyncpa [#allocation3], 1
    %86 = vsyncpa [#allocation4], 1

</llo_original>
